<compile_context>
chip_gen: v7x
topology: tpu7x:2x2x1
jax: 0.10.0
libtpu: 0.0.40
codegen_flags: <defaults>
</compile_context>

<pallas_src>
import jax
import jax.numpy as jnp
from jax.experimental import pallas as pl
from jax.experimental.pallas import tpu as pltpu

LANE = 128


def _round_up(x, m):
    return ((x + m - 1) // m) * m


def mlp_kernel(x_ref, w0_ref, b0_ref, w1_ref, b1_ref, w2_ref, b2_ref,
               o_ref, xpad_ref):
    """Fused 3-layer MLP on one batch tile.

    bf16 matmuls with f32 accumulation; bias add + ReLU in f32.
    x arrives unpadded (d_in lanes); it is cast to bf16 and zero-extended to
    128 lanes in the xpad scratch (padding lanes zeroed once at step 0, they
    persist across grid steps).
    """
    d_in = x_ref.shape[-1]
    d_out = o_ref.shape[-1]

    @pl.when(pl.program_id(0) == 0)
    def _():
        xpad_ref[...] = jnp.zeros_like(xpad_ref)

    # Only the first d_in lanes are refreshed each step (masked store);
    # lanes [d_in:128] stay zero.
    xpad_ref[:, :d_in] = x_ref[...].astype(xpad_ref.dtype)

    h = jnp.dot(xpad_ref[...], w0_ref[...], preferred_element_type=jnp.float32)
    h = jnp.maximum(h + b0_ref[...], 0.0)

    h = jnp.dot(h.astype(w1_ref.dtype), w1_ref[...],
                preferred_element_type=jnp.float32)
    h = jnp.maximum(h + b1_ref[...], 0.0)

    h = jnp.dot(h.astype(w2_ref.dtype), w2_ref[...],
                preferred_element_type=jnp.float32)
    # Final output: slice to the real output width, add bias, store narrow.
    o_ref[...] = (h[:, :d_out] + b2_ref[...]).astype(o_ref.dtype)


def mlp_pallas(x, params, *, block_rows=2048, compute_dtype=jnp.bfloat16):
    """params = [(w0, b0), (w1, b1), (w2, b2)] with w: (in, out), b: (1, out)."""
    (w0, b0), (w1, b1), (w2, b2) = params
    B, d_in = x.shape
    d_h0, d_h1, d_out = w0.shape[1], w1.shape[1], w2.shape[1]

    # Only the (tiny, VMEM-resident) weight dims are padded to 128 lanes;
    # HBM-facing x / output keep their true widths.
    dp_in, dp_h0, dp_h1, dp_out = (
        _round_up(d, LANE) for d in (d_in, d_h0, d_h1, d_out))

    # Batch tile: single block if the batch fits, else block_rows (multiple of
    # 16 for bf16 sublane packing).  No batch padding of x in HBM.
    tb = B if B <= block_rows else block_rows
    grid = (pl.cdiv(B, tb),)

    def pad2(a, rows, cols, dtype):
        out = jnp.zeros((rows, cols), dtype)
        return out.at[: a.shape[0], : a.shape[1]].set(a.astype(dtype))

    # Weight/bias padding: a few KiB, one-time, negligible HBM cost.
    w0p = pad2(w0, dp_in, dp_h0, compute_dtype)
    w1p = pad2(w1, dp_h0, dp_h1, compute_dtype)
    w2p = pad2(w2, dp_h1, dp_out, compute_dtype)
    b0p = pad2(b0, 1, dp_h0, jnp.float32)
    b1p = pad2(b1, 1, dp_h1, jnp.float32)
    b2f = b2.astype(jnp.float32)                      # (1, d_out), unpadded

    def resident(shape):
        # Constant block index -> fetched once, stays resident in VMEM.
        return pl.BlockSpec(shape, lambda i: (0, 0))

    # True (unpadded) work + post-restructuring HBM bytes.
    flops = 2 * B * (d_in * d_h0 + d_h0 * d_h1 + d_h1 * d_out)
    bytes_accessed = (
        x.size * x.dtype.itemsize
        + sum(a.size * a.dtype.itemsize
              for a in (w0p, b0p, w1p, b1p, w2p, b2f))
        + B * d_out * 4)

    out = pl.pallas_call(
        mlp_kernel,
        out_shape=jax.ShapeDtypeStruct((B, d_out), jnp.float32),
        grid=grid,
        in_specs=[
            pl.BlockSpec((tb, d_in), lambda i: (i, 0)),   # x: streamed, unpadded
            resident((dp_in, dp_h0)), resident((1, dp_h0)),
            resident((dp_h0, dp_h1)), resident((1, dp_h1)),
            resident((dp_h1, dp_out)), resident((1, d_out)),
        ],
        out_specs=pl.BlockSpec((tb, d_out), lambda i: (i, 0)),
        scratch_shapes=[pltpu.VMEM((tb, dp_in), compute_dtype)],
        compiler_params=pltpu.CompilerParams(
            dimension_semantics=("parallel",)),
        cost_estimate=pl.CostEstimate(
            flops=flops, transcendentals=0, bytes_accessed=bytes_accessed),
    )(x, w0p, b0p, w1p, b1p, w2p, b2f)

    return out


def mlp_reference(x, params):
    h = x
    for i, (w, b) in enumerate(params):
        h = h @ w + b
        if i != len(params) - 1:
            h = jnp.maximum(h, 0.0)
    return h


def mlp_reference_bf16(x, params):
    """Mirrors the kernel's quantization: bf16 matmul operands, f32 accumulation."""
    h = x
    for i, (w, b) in enumerate(params):
        h = jnp.dot(h.astype(jnp.bfloat16), w.astype(jnp.bfloat16),
                    preferred_element_type=jnp.float32) + b
        if i != len(params) - 1:
            h = jnp.maximum(h, 0.0)
    return h


def init_params(key, units):
    """Deterministic init mimicking nn.Linear's uniform(-1/sqrt(in), 1/sqrt(in))."""
    params = []
    for (d_in, d_out) in zip(units[:-1], units[1:]):
        key, kw, kb = jax.random.split(key, 3)
        bound = 1.0 / jnp.sqrt(d_in)
        w = jax.random.uniform(kw, (d_in, d_out), jnp.float32, -bound, bound)
        b = jax.random.uniform(kb, (1, d_out), jnp.float32, -bound, bound)
        params.append((w, b))
    return params


def _check(out, x, params, units):
    ref_q = mlp_reference_bf16(x, params)   # same bf16 quantization as the kernel
    ref_f = mlp_reference(x, params)        # full f32 reference (loose check)
    assert out.shape == (x.shape[0], units[-1])
    assert jnp.allclose(out, ref_q, atol=1e-3, rtol=1e-3), "mismatch vs bf16 reference"
    assert jnp.allclose(out, ref_f, atol=5e-2, rtol=5e-2), "mismatch vs f32 reference"


if __name__ == "__main__":
    units = [32, 64, 64, 16]   # units passed to MLP(...)
    key = jax.random.PRNGKey(0)
    kx, kp, kx2 = jax.random.split(key, 3)
    params = init_params(kp, units)

    # Small demo batch (single tile).
    batch = 8
    x = jax.random.normal(kx, (batch, units[0]), jnp.float32)
    out = jax.block_until_ready(mlp_pallas(x, params))
    _check(out, x, params, units)

    # Multi-tile path: streamed batch blocks, weights resident across steps.
    batch2 = 192
    x2 = jax.random.normal(kx2, (batch2, units[0]), jnp.float32)
    out2 = jax.block_until_ready(mlp_pallas(x2, params, block_rows=64))
    _check(out2, x2, params, units)

    print("KERNEL_OK")
</pallas_src>

<mosaic_0001>
module attributes {stable_mosaic.version = 11 : i64} {
  func.func @mlp_kernel(%arg0: i32, %arg1: memref<8x32xf32, #tpu.memory_space<vmem>>, %arg2: memref<128x128xbf16, #tpu.memory_space<vmem>>, %arg3: memref<1x128xf32, #tpu.memory_space<vmem>>, %arg4: memref<128x128xbf16, #tpu.memory_space<vmem>>, %arg5: memref<1x128xf32, #tpu.memory_space<vmem>>, %arg6: memref<128x128xbf16, #tpu.memory_space<vmem>>, %arg7: memref<1x16xf32, #tpu.memory_space<vmem>>, %arg8: memref<8x16xf32, #tpu.memory_space<vmem>>, %arg9: memref<8x128xbf16, #tpu.memory_space<vmem>>) attributes {dimension_semantics = [#tpu.dimension_semantics<parallel>], iteration_bounds = array<i64: 1>, scalar_prefetch = 0 : i64, scratch_operands = 1 : i64, tpu.core_type = #tpu.core_type<tc>, window_params = [{transform_indices = @transform_0, window_bounds = array<i64: 8, 32>}, {pipeline_mode = #tpu.pipeline_mode<synchronous>, transform_indices = @transform_1, window_bounds = array<i64: 128, 128>}, {pipeline_mode = #tpu.pipeline_mode<synchronous>, transform_indices = @transform_2, window_bounds = array<i64: 1, 128>}, {pipeline_mode = #tpu.pipeline_mode<synchronous>, transform_indices = @transform_3, window_bounds = array<i64: 128, 128>}, {pipeline_mode = #tpu.pipeline_mode<synchronous>, transform_indices = @transform_4, window_bounds = array<i64: 1, 128>}, {pipeline_mode = #tpu.pipeline_mode<synchronous>, transform_indices = @transform_5, window_bounds = array<i64: 128, 128>}, {pipeline_mode = #tpu.pipeline_mode<synchronous>, transform_indices = @transform_6, window_bounds = array<i64: 1, 16>}, {transform_indices = @transform_7, window_bounds = array<i64: 8, 16>}]} {
    %c0_i32 = arith.constant 0 : i32
    %0 = arith.cmpi eq, %arg0, %c0_i32 : i32
    %1 = arith.extui %0 : i1 to i32
    %c0_i32_0 = arith.constant 0 : i32
    %2 = arith.cmpi ne, %1, %c0_i32_0 : i32
    scf.if %2 {
      %cst_24 = arith.constant 0.000000e+00 : bf16
      %30 = vector.broadcast %cst_24 : bf16 to vector<8x128xbf16>
      %c0_25 = arith.constant 0 : index
      %c0_26 = arith.constant 0 : index
      %31 = vector.load %arg9[%c0_25, %c0_26] : memref<8x128xbf16, #tpu.memory_space<vmem>>, vector<8x128xbf16>
      tpu.vector_store %arg9[%c0_25, %c0_26], %30 {strides = array<i32>} : memref<8x128xbf16, #tpu.memory_space<vmem>>, vector<8x128xbf16>,
    } else {
    }
    %c0 = arith.constant 0 : index
    %c0_1 = arith.constant 0 : index
    %3 = vector.load %arg1[%c0, %c0_1] : memref<8x32xf32, #tpu.memory_space<vmem>>, vector<8x32xf32>
    %4 = arith.truncf %3 : vector<8x32xf32> to vector<8x32xbf16>
    %c0_2 = arith.constant 0 : index
    %c0_3 = arith.constant 0 : index
    %5 = vector.load %arg9[%c0_2, %c0_3] : memref<8x128xbf16, #tpu.memory_space<vmem>>, vector<8x32xbf16>
    tpu.vector_store %arg9[%c0_2, %c0_3], %4 {strides = array<i32>} : memref<8x128xbf16, #tpu.memory_space<vmem>>, vector<8x32xbf16>,
    %c0_4 = arith.constant 0 : index
    %c0_5 = arith.constant 0 : index
    %6 = vector.load %arg9[%c0_4, %c0_5] : memref<8x128xbf16, #tpu.memory_space<vmem>>, vector<8x128xbf16>
    %c0_6 = arith.constant 0 : index
    %c0_7 = arith.constant 0 : index
    %7 = vector.load %arg2[%c0_6, %c0_7] : memref<128x128xbf16, #tpu.memory_space<vmem>>, vector<128x128xbf16>
    %cst = arith.constant dense<0.000000e+00> : vector<8x128xf32>
    %8 = tpu.matmul %6, %7, %cst {dimension_numbers = #tpu.dot_dimension_numbers<[1], [0], [0], [1], [0, 0, 1, 1], [], []>} : vector<8x128xbf16>, vector<128x128xbf16>, vector<8x128xf32> -> vector<8x128xf32>
    %c0_8 = arith.constant 0 : index
    %c0_9 = arith.constant 0 : index
    %9 = vector.load %arg3[%c0_8, %c0_9] : memref<1x128xf32, #tpu.memory_space<vmem>>, vector<1x128xf32>
    %10 = vector.broadcast %9 : vector<1x128xf32> to vector<8x128xf32>
    %11 = arith.addf %8, %10 : vector<8x128xf32>
    %cst_10 = arith.constant 0.000000e+00 : f32
    %12 = vector.broadcast %cst_10 : f32 to vector<8x128xf32>
    %13 = arith.maximumf %11, %12 : vector<8x128xf32>
    %14 = arith.truncf %13 : vector<8x128xf32> to vector<8x128xbf16>
    %c0_11 = arith.constant 0 : index
    %c0_12 = arith.constant 0 : index
    %15 = vector.load %arg4[%c0_11, %c0_12] : memref<128x128xbf16, #tpu.memory_space<vmem>>, vector<128x128xbf16>
    %cst_13 = arith.constant dense<0.000000e+00> : vector<8x128xf32>
    %16 = tpu.matmul %14, %15, %cst_13 {dimension_numbers = #tpu.dot_dimension_numbers<[1], [0], [0], [1], [0, 0, 1, 1], [], []>} : vector<8x128xbf16>, vector<128x128xbf16>, vector<8x128xf32> -> vector<8x128xf32>
    %c0_14 = arith.constant 0 : index
    %c0_15 = arith.constant 0 : index
    %17 = vector.load %arg5[%c0_14, %c0_15] : memref<1x128xf32, #tpu.memory_space<vmem>>, vector<1x128xf32>
    %18 = vector.broadcast %17 : vector<1x128xf32> to vector<8x128xf32>
    %19 = arith.addf %16, %18 : vector<8x128xf32>
    %cst_16 = arith.constant 0.000000e+00 : f32
    %20 = vector.broadcast %cst_16 : f32 to vector<8x128xf32>
    %21 = arith.maximumf %19, %20 : vector<8x128xf32>
    %22 = arith.truncf %21 : vector<8x128xf32> to vector<8x128xbf16>
    %c0_17 = arith.constant 0 : index
    %c0_18 = arith.constant 0 : index
    %23 = vector.load %arg6[%c0_17, %c0_18] : memref<128x128xbf16, #tpu.memory_space<vmem>>, vector<128x128xbf16>
    %cst_19 = arith.constant dense<0.000000e+00> : vector<8x128xf32>
    %24 = tpu.matmul %22, %23, %cst_19 {dimension_numbers = #tpu.dot_dimension_numbers<[1], [0], [0], [1], [0, 0, 1, 1], [], []>} : vector<8x128xbf16>, vector<128x128xbf16>, vector<8x128xf32> -> vector<8x128xf32>
    %25 = vector.extract_strided_slice %24 {offsets = [0, 0], sizes = [8, 16], strides = [1, 1]} : vector<8x128xf32> to vector<8x16xf32>
    %c0_20 = arith.constant 0 : index
    %c0_21 = arith.constant 0 : index
    %26 = vector.load %arg7[%c0_20, %c0_21] : memref<1x16xf32, #tpu.memory_space<vmem>>, vector<1x16xf32>
    %27 = vector.broadcast %26 : vector<1x16xf32> to vector<8x16xf32>
    %28 = arith.addf %25, %27 : vector<8x16xf32>
    %c0_22 = arith.constant 0 : index
    %c0_23 = arith.constant 0 : index
    %29 = vector.load %arg8[%c0_22, %c0_23] : memref<8x16xf32, #tpu.memory_space<vmem>>, vector<8x16xf32>
    tpu.vector_store %arg8[%c0_22, %c0_23], %28 {strides = array<i32>} : memref<8x16xf32, #tpu.memory_space<vmem>>, vector<8x16xf32>,
    return
  }
  func.func @transform_0(%arg0: i32) -> (i32, i32) {
    %c0_i32 = arith.constant 0 : i32
    %c0_i32_0 = arith.constant 0 : i32
    return %arg0, %c0_i32 : i32, i32
  }
  func.func @transform_1(%arg0: i32) -> (i32, i32) {
    %c0_i32 = arith.constant 0 : i32
    %c0_i32_0 = arith.constant 0 : i32
    %c0_i32_1 = arith.constant 0 : i32
    return %c0_i32, %c0_i32_0 : i32, i32
  }
  func.func @transform_2(%arg0: i32) -> (i32, i32) {
    %c0_i32 = arith.constant 0 : i32
    %c0_i32_0 = arith.constant 0 : i32
    %c0_i32_1 = arith.constant 0 : i32
    return %c0_i32, %c0_i32_0 : i32, i32
  }
  func.func @transform_3(%arg0: i32) -> (i32, i32) {
    %c0_i32 = arith.constant 0 : i32
    %c0_i32_0 = arith.constant 0 : i32
    %c0_i32_1 = arith.constant 0 : i32
    return %c0_i32, %c0_i32_0 : i32, i32
  }
  func.func @transform_4(%arg0: i32) -> (i32, i32) {
    %c0_i32 = arith.constant 0 : i32
    %c0_i32_0 = arith.constant 0 : i32
    %c0_i32_1 = arith.constant 0 : i32
    return %c0_i32, %c0_i32_0 : i32, i32
  }
  func.func @transform_5(%arg0: i32) -> (i32, i32) {
    %c0_i32 = arith.constant 0 : i32
    %c0_i32_0 = arith.constant 0 : i32
    %c0_i32_1 = arith.constant 0 : i32
    return %c0_i32, %c0_i32_0 : i32, i32
  }
  func.func @transform_6(%arg0: i32) -> (i32, i32) {
    %c0_i32 = arith.constant 0 : i32
    %c0_i32_0 = arith.constant 0 : i32
    %c0_i32_1 = arith.constant 0 : i32
    return %c0_i32, %c0_i32_0 : i32, i32
  }
  func.func @transform_7(%arg0: i32) -> (i32, i32) {
    %c0_i32 = arith.constant 0 : i32
    %c0_i32_0 = arith.constant 0 : i32
    return %arg0, %c0_i32 : i32, i32
  }
}

</mosaic_0001>

<llo_original>
// kernel: tpu_custom_call.1
$region0: #{tpu_custom_call.1}
  #allocation0 [shape = 'u32[]', space=smem, size = 0x4, offset = 0x4, fixed_abs, tag = 'smem constant byte address 0x4 - core index']
  #allocation1 [shape = 'u32[144,128]{1,0:T(1,128)}', space=vmem, size = 0x12000, scoped, tag = 'internal scratch']
  #allocation2 [shape = 'bf16[8,128]{1,0:T(8,128)(2,1)}', space=vmem, size = 0x800, scoped, tag = 'scratch operand']
  %s0 = inlined_call_operand.hbm [shape: f32[8,32], index: 0, kind: input, shape index: {}]
  %s1 = inlined_call_operand.hbm [shape: bf16[128,128], index: 1, kind: input, shape index: {}]
  %s2 = inlined_call_operand.vmem [shape: f32[1,128], index: 2, kind: input, shape index: {}]
  %s3 = inlined_call_operand.hbm [shape: bf16[128,128], index: 3, kind: input, shape index: {}]
  %s4 = inlined_call_operand.vmem [shape: f32[1,128], index: 4, kind: input, shape index: {}]
  %s5 = inlined_call_operand.hbm [shape: bf16[128,128], index: 5, kind: input, shape index: {}]
  %s6 = inlined_call_operand.vmem [shape: f32[1,16], index: 6, kind: input, shape index: {}]
  %s7 = inlined_call_operand.hbm [shape: f32[8,16], index: 7, kind: output, shape index: {}]
  %s8 = sld [smem:[#allocation0]]
  $region58: #{tpu_custom_call.1} parent=0
    _
  %s10 = ssub.s32 1, %s8
  %s11 = scalar_select 0, %s10, %s8
  $region1: #{tpu_custom_call.1} parent=0
    #allocation3 [shape = 'u8[4096]{0}', space=vmem, size = 0x1000, scoped, tag = 'input window, operand 0, single buffered']
    #allocation4 [shape = 's32[1]{0}', space=sflag, size = 0x4, scoped, tag = 'scoped memory for tpu_custom_call.1']
    #allocation5 [shape = 's32[1]{0}', space=sflag, size = 0x4, scoped, tag = 'scoped memory for tpu_custom_call.1']
    #allocation6 [shape = 'u8[32768]{0}', space=vmem, size = 0x8000, scoped, tag = 'input window, operand 1, single buffered']
    #allocation7 [shape = 's32[1]{0}', space=sflag, size = 0x4, scoped, tag = 'scoped memory for tpu_custom_call.1']
    #allocation8 [shape = 'u8[32768]{0}', space=vmem, size = 0x8000, scoped, tag = 'input window, operand 3, single buffered']
    #allocation9 [shape = 'u8[32768]{0}', space=vmem, size = 0x8000, scoped, tag = 'input window, operand 5, single buffered']
    #allocation10 [shape = 's32[1]{0}', space=sflag, size = 0x4, scoped, tag = 'scoped memory for tpu_custom_call.1']
    #allocation11 [shape = 'u8[4096]{0}', space=vmem, size = 0x1000, scoped, tag = 'output window, operand 0, single buffered']
    %12 = vsyncpa [#allocation4], 0
    %13 = vsyncpa [#allocation7], 0
    %14 = vsyncpa [#allocation10], 0
    %15 = vsyncpa [#allocation5], 0
    // Predicated region
    $region2: #{tpu_custom_call.1} parent=1 // pred_check
      _
    $region3: #{tpu_custom_call.1} parent=1 // pred_check_branch
      %17 = sbr.rel (0) target = $region5
    $region4: #{tpu_custom_call.1} parent=1 // pred_region
      %s19 = ssub.s32 128, 128
      %20 = vsyncadd [#allocation4], %s19
      %s22 = sshll.u32 [#allocation3], 4
      %s23 = int_to_ptr.vmem [resolvable:$true] %s22
      %25 = dma.hbm_to_vmem [thread:$0]  %s0, 128, %s23, [#allocation4]
    $region5: #{tpu_custom_call.1} parent=1 // pred_fallthru
      _
    // Predicated region
    $region6: #{tpu_custom_call.1} parent=1 // pred_check
      _
    $region7: #{tpu_custom_call.1} parent=1 // pred_check_branch
      %27 = sbr.rel (0) target = $region9
    $region8: #{tpu_custom_call.1} parent=1 // pred_region
      %s29 = ssub.s32 1024, 1024
      %30 = vsyncadd [#allocation7], %s29
      %s31 = sshll.u32 [#allocation6], 4
      %s32 = int_to_ptr.vmem [resolvable:$true] %s31
      %37 = dma.hbm_to_vmem [thread:$0]  %s1, 1024, %s32, [#allocation7], 64, 64, 4
    $region9: #{tpu_custom_call.1} parent=1 // pred_fallthru
      _
    // Predicated region
    $region10: #{tpu_custom_call.1} parent=1 // pred_check
      _
    $region11: #{tpu_custom_call.1} parent=1 // pred_check_branch
      %39 = sbr.rel (0) target = $region13
    $region12: #{tpu_custom_call.1} parent=1 // pred_region
      _
    $region13: #{tpu_custom_call.1} parent=1 // pred_fallthru
      _
    // Predicated region
    $region14: #{tpu_custom_call.1} parent=1 // pred_check
      _
    $region15: #{tpu_custom_call.1} parent=1 // pred_check_branch
      %41 = sbr.rel (0) target = $region17
    $region16: #{tpu_custom_call.1} parent=1 // pred_region
      %s43 = ssub.s32 1024, 1024
      %44 = vsyncadd [#allocation7], %s43
      %s45 = sshll.u32 [#allocation8], 4
      %s46 = int_to_ptr.vmem [resolvable:$true] %s45
      %51 = dma.hbm_to_vmem [thread:$0]  %s3, 1024, %s46, [#allocation7], 64, 64, 4
    $region17: #{tpu_custom_call.1} parent=1 // pred_fallthru
      _
    // Predicated region
    $region18: #{tpu_custom_call.1} parent=1 // pred_check
      _
    $region19: #{tpu_custom_call.1} parent=1 // pred_check_branch
      %53 = sbr.rel (0) target = $region21
    $region20: #{tpu_custom_call.1} parent=1 // pred_region
      _
    $region21: #{tpu_custom_call.1} parent=1 // pred_fallthru
      _
    // Predicated region
    $region22: #{tpu_custom_call.1} parent=1 // pred_check
      _
    $region23: #{tpu_custom_call.1} parent=1 // pred_check_branch
      %55 = sbr.rel (0) target = $region25
    $region24: #{tpu_custom_call.1} parent=1 // pred_region
      %s57 = ssub.s32 1024, 1024
      %58 = vsyncadd [#allocation10], %s57
      %s59 = sshll.u32 [#allocation9], 4
      %s60 = int_to_ptr.vmem [resolvable:$true] %s59
      %65 = dma.hbm_to_vmem [thread:$0]  %s5, 1024, %s60, [#allocation10], 64, 64, 4
    $region25: #{tpu_custom_call.1} parent=1 // pred_fallthru
      _
    // Predicated region
    $region26: #{tpu_custom_call.1} parent=1 // pred_check
      _
    $region27: #{tpu_custom_call.1} parent=1 // pred_check_branch
      %67 = sbr.rel (0) target = $region29
    $region28: #{tpu_custom_call.1} parent=1 // pred_region
      _
    $region29: #{tpu_custom_call.1} parent=1 // pred_fallthru
      _
    // Predicated region
    $region30: #{tpu_custom_call.1} parent=1 // pred_check
      _
    $region31: #{tpu_custom_call.1} parent=1 // pred_check_branch
      %69 = sbr.rel (0) target = $region33
    $region32: #{tpu_custom_call.1} parent=1 // pred_region
      %70 = dma.done [#allocation4], 128
    $region33: #{tpu_custom_call.1} parent=1 // pred_fallthru
      _
    // Predicated region
    $region34: #{tpu_custom_call.1} parent=1 // pred_check
      _
    $region35: #{tpu_custom_call.1} parent=1 // pred_check_branch
      %72 = sbr.rel (0) target = $region37
    $region36: #{tpu_custom_call.1} parent=1 // pred_region
      %73 = dma.done [#allocation7], 1024
    $region37: #{tpu_custom_call.1} parent=1 // pred_fallthru
      _
    // Predicated region
    $region38: #{tpu_custom_call.1} parent=1 // pred_check
      _
    $region39: #{tpu_custom_call.1} parent=1 // pred_check_branch
      %75 = sbr.rel (0) target = $region41
    $region40: #{tpu_custom_call.1} parent=1 // pred_region
      %76 = dma.done [#allocation7], 1024
    $region41: #{tpu_custom_call.1} parent=1 // pred_fallthru
      _
    // Predicated region
    $region42: #{tpu_custom_call.1} parent=1 // pred_check
      _
    $region43: #{tpu_custom_call.1} parent=1 // pred_check_branch
      %78 = sbr.rel (0) target = $region45
    $region44: #{tpu_custom_call.1} parent=1 // pred_region
      %79 = dma.done [#allocation10], 1024
    $region45: #{tpu_custom_call.1} parent=1 // pred_fallthru
      _
    %p81 = scmp.eq.s32.totalorder 0, 0
    // Predicated region
    $region46: #{tpu_custom_call.1} parent=1 // pred_check
      %p82 = pneg %p81
    $region47: #{tpu_custom_call.1} parent=1 // pred_check_branch
      %84 = sbr.rel (%p82) target = $region49
    $region48: #{tpu_custom_call.1} parent=1 // pred_region
      %85 = vst [vmem:[#allocation2] sm:$0xf] 0
    $region49: #{tpu_custom_call.1} parent=1 // pred_fallthru
      _
    %v86 = vld [vmem:[#allocation3] sm:$0xff]
    %v87 = vpack.c.bf16 %v86, %v86
    %vm88 = vcmask 257024
    %89 = vst.msk [vmem:[#allocation2] sm:$0xf] %vm88, %v87
    %v90 = vld [vmem:[#allocation2] sm:$0xf]
    %v91 = vld [vmem:[#allocation6] sm:$0xf]
    %v92 = vld [vmem:[#allocation6 + $0x4] sm:$0xf]
    %v93 = vld [vmem:[#allocation6 + $0x8] sm:$0xf]
    %v94 = vld [vmem:[#allocation6 + $0xc] sm:$0xf]
    %v95 = vld [vmem:[#allocation6 + $0x10] sm:$0xf]
    %v96 = vld [vmem:[#allocation6 + $0x14] sm:$0xf]
    %v97 = vld [vmem:[#allocation6 + $0x18] sm:$0xf]
    %v98 = vld [vmem:[#allocation6 + $0x1c] sm:$0xf]
    %v99 = vld [vmem:[#allocation6 + $0x20] sm:$0xf]
    %v100 = vld [vmem:[#allocation6 + $0x24] sm:$0xf]
    %v101 = vld [vmem:[#allocation6 + $0x28] sm:$0xf]
    %v102 = vld [vmem:[#allocation6 + $0x2c] sm:$0xf]
    %v103 = vld [vmem:[#allocation6 + $0x30] sm:$0xf]
    %v104 = vld [vmem:[#allocation6 + $0x34] sm:$0xf]
    %v105 = vld [vmem:[#allocation6 + $0x38] sm:$0xf]
    %v106 = vld [vmem:[#allocation6 + $0x3c] sm:$0xf]
    %v107 = vld [vmem:[%s2] sm:$0x1]
    %v109 = vlaneseq
    %v110 = vshrl.u32 %v109, 7
    %v111 = vsub.s32 0, %v110
    %v112 = vrot.slane %v107, %v111
    %v130 = vunpack.c.l.b16 %v91
    %v131 = vunpack.c.l.b16 %v92
    %v132 = vunpack.c.l.b16 %v93
    %v133 = vunpack.c.l.b16 %v94
    %v134 = vunpack.c.l.b16 %v95
    %v135 = vunpack.c.l.b16 %v96
    %v136 = vunpack.c.l.b16 %v97
    %v137 = vunpack.c.l.b16 %v98
    %v138 = vunpack.c.l.b16 %v99
    %v139 = vunpack.c.l.b16 %v100
    %v140 = vunpack.c.l.b16 %v101
    %v141 = vunpack.c.l.b16 %v102
    %v142 = vunpack.c.l.b16 %v103
    %v143 = vunpack.c.l.b16 %v104
    %v144 = vunpack.c.l.b16 %v105
    %v145 = vunpack.c.l.b16 %v106
    %v146 = vpack.c.b16 %v131, %v130
    %v147 = vpack.c.b16 %v133, %v132
    %v148 = vpack.c.b16 %v135, %v134
    %v149 = vpack.c.b16 %v137, %v136
    %v150 = vpack.c.b16 %v139, %v138
    %v151 = vpack.c.b16 %v141, %v140
    %v152 = vpack.c.b16 %v143, %v142
    %v153 = vpack.c.b16 %v145, %v144
    %162 = vmatprep.subr.bf16.mxu0 0
    %163 = vmatpush1.bf16.msra.mxu0 %v146
    %164 = vmatprep.subr.bf16.mxu0 0
    %165 = vmatpush1.bf16.msra.mxu0 %v147
    %166 = vmatprep.subr.bf16.mxu0 0
    %167 = vmatpush1.bf16.msra.mxu0 %v148
    %168 = vmatprep.subr.bf16.mxu0 0
    %169 = vmatpush1.bf16.msra.mxu0 %v149
    %170 = vmatprep.subr.bf16.mxu0 0
    %171 = vmatpush1.bf16.msra.mxu0 %v150
    %172 = vmatprep.subr.bf16.mxu0 0
    %173 = vmatpush1.bf16.msra.mxu0 %v151
    %174 = vmatprep.subr.bf16.mxu0 0
    %175 = vmatpush1.bf16.msra.mxu0 %v152
    %176 = vmatprep.subr.bf16.mxu0 0
    %177 = vmatpush1.bf16.msra.mxu0 %v153
    %178 = vmatprep.subr.bf16.mxu0 0
    %179 = vmatpush1.bf16.msra.mxu0 0
    %180 = vmatprep.subr.bf16.mxu0 0
    %181 = vmatpush1.bf16.msra.mxu0 0
    %182 = vmatprep.subr.bf16.mxu0 0
    %183 = vmatpush1.bf16.msra.mxu0 0
    %184 = vmatprep.subr.bf16.mxu0 0
    %185 = vmatpush1.bf16.msra.mxu0 0
    %186 = vmatprep.subr.bf16.mxu0 0
    %187 = vmatpush1.bf16.msra.mxu0 0
    %188 = vmatprep.subr.bf16.mxu0 0
    %189 = vmatpush1.bf16.msra.mxu0 0
    %190 = vmatprep.subr.bf16.mxu0 0
    %191 = vmatpush1.bf16.msra.mxu0 0
    %192 = vmatprep.subr.bf16.mxu0 0
    %193 = vmatpush1.bf16.msra.mxu0 0
    %194 = vmatprep.mubr.bf16.mxu0 0
    %195 = vmatmul.mubr.bf16.gmra.mrb[0].mxu0 %v90
    %v196 = vpop.f32.mrb[0].mxu0
    %v197 = vadd.f32 %v112, %v196
    %v198 = vpop.f32.mrb[0].mxu0
    %v199 = vpop.f32.mrb[0].mxu0
    %v200 = vpop.f32.mrb[0].mxu0
    %201 = vdwg.mxu0
    %v202 = vmax.f32 %v197, 0.0
    %v203 = vpack.c.bf16 %v202, %v202
    %v204 = vld [vmem:[#allocation8] sm:$0xf]
    %v205 = vld [vmem:[#allocation8 + $0x4] sm:$0xf]
    %v206 = vld [vmem:[#allocation8 + $0x8] sm:$0xf]
    %v207 = vld [vmem:[#allocation8 + $0xc] sm:$0xf]
    %v208 = vld [vmem:[#allocation8 + $0x10] sm:$0xf]
    %v209 = vld [vmem:[#allocation8 + $0x14] sm:$0xf]
    %v210 = vld [vmem:[#allocation8 + $0x18] sm:$0xf]
    %v211 = vld [vmem:[#allocation8 + $0x1c] sm:$0xf]
    %v212 = vld [vmem:[#allocation8 + $0x20] sm:$0xf]
    %v213 = vld [vmem:[#allocation8 + $0x24] sm:$0xf]
    %v214 = vld [vmem:[#allocation8 + $0x28] sm:$0xf]
    %v215 = vld [vmem:[#allocation8 + $0x2c] sm:$0xf]
    %v216 = vld [vmem:[#allocation8 + $0x30] sm:$0xf]
    %v217 = vld [vmem:[#allocation8 + $0x34] sm:$0xf]
    %v218 = vld [vmem:[#allocation8 + $0x38] sm:$0xf]
    %v219 = vld [vmem:[#allocation8 + $0x3c] sm:$0xf]
    %v220 = vld [vmem:[%s4] sm:$0x1]
    %v222 = vlaneseq
    %v223 = vshrl.u32 %v222, 7
    %v224 = vsub.s32 0, %v223
    %v225 = vrot.slane %v220, %v224
    %v243 = vunpack.c.l.b16 %v204
    %v244 = vunpack.c.l.b16 %v205
    %v245 = vunpack.c.l.b16 %v206
    %v246 = vunpack.c.l.b16 %v207
    %v247 = vunpack.c.l.b16 %v208
    %v248 = vunpack.c.l.b16 %v209
    %v249 = vunpack.c.l.b16 %v210
    %v250 = vunpack.c.l.b16 %v211
    %v251 = vunpack.c.l.b16 %v212
    %v252 = vunpack.c.l.b16 %v213
    %v253 = vunpack.c.l.b16 %v214
    %v254 = vunpack.c.l.b16 %v215
    %v255 = vunpack.c.l.b16 %v216
    %v256 = vunpack.c.l.b16 %v217
    %v257 = vunpack.c.l.b16 %v218
    %v258 = vunpack.c.l.b16 %v219
    %v259 = vpack.c.b16 %v244, %v243
    %v260 = vpack.c.b16 %v246, %v245
    %v261 = vpack.c.b16 %v248, %v247
    %v262 = vpack.c.b16 %v250, %v249
    %v263 = vpack.c.b16 %v252, %v251
    %v264 = vpack.c.b16 %v254, %v253
    %v265 = vpack.c.b16 %v256, %v255
    %v266 = vpack.c.b16 %v258, %v257
    %275 = vmatprep.subr.bf16.mxu0 0
    %276 = vmatpush1.bf16.msra.mxu0 %v259
    %277 = vmatprep.subr.bf16.mxu0 0
    %278 = vmatpush1.bf16.msra.mxu0 %v260
    %279 = vmatprep.subr.bf16.mxu0 0
    %280 = vmatpush1.bf16.msra.mxu0 %v261
    %281 = vmatprep.subr.bf16.mxu0 0
    %282 = vmatpush1.bf16.msra.mxu0 %v262
    %283 = vmatprep.subr.bf16.mxu0 0
    %284 = vmatpush1.bf16.msra.mxu0 %v263
    %285 = vmatprep.subr.bf16.mxu0 0
    %286 = vmatpush1.bf16.msra.mxu0 %v264
    %287 = vmatprep.subr.bf16.mxu0 0
    %288 = vmatpush1.bf16.msra.mxu0 %v265
    %289 = vmatprep.subr.bf16.mxu0 0
    %290 = vmatpush1.bf16.msra.mxu0 %v266
    %291 = vmatprep.subr.bf16.mxu0 0
    %292 = vmatpush1.bf16.msra.mxu0 0
    %293 = vmatprep.subr.bf16.mxu0 0
    %294 = vmatpush1.bf16.msra.mxu0 0
    %295 = vmatprep.subr.bf16.mxu0 0
    %296 = vmatpush1.bf16.msra.mxu0 0
    %297 = vmatprep.subr.bf16.mxu0 0
    %298 = vmatpush1.bf16.msra.mxu0 0
    %299 = vmatprep.subr.bf16.mxu0 0
    %300 = vmatpush1.bf16.msra.mxu0 0
    %301 = vmatprep.subr.bf16.mxu0 0
    %302 = vmatpush1.bf16.msra.mxu0 0
    %303 = vmatprep.subr.bf16.mxu0 0
    %304 = vmatpush1.bf16.msra.mxu0 0
    %305 = vmatprep.subr.bf16.mxu0 0
    %306 = vmatpush1.bf16.msra.mxu0 0
    %307 = vmatprep.mubr.bf16.mxu0 0
    %308 = vmatmul.mubr.bf16.gmra.mrb[0].mxu0 %v203
    %v309 = vpop.f32.mrb[0].mxu0
    %v310 = vadd.f32 %v225, %v309
    %v311 = vpop.f32.mrb[0].mxu0
    %v312 = vpop.f32.mrb[0].mxu0
    %v313 = vpop.f32.mrb[0].mxu0
    %314 = vdwg.mxu0
    %v315 = vmax.f32 %v310, 0.0
    %v316 = vpack.c.bf16 %v315, %v315
    %v317 = vld [vmem:[#allocation9] sm:$0xf]
    %v318 = vld [vmem:[#allocation9 + $0x4] sm:$0xf]
    %v319 = vld [vmem:[#allocation9 + $0x8] sm:$0xf]
    %v320 = vld [vmem:[#allocation9 + $0xc] sm:$0xf]
    %v321 = vld [vmem:[#allocation9 + $0x10] sm:$0xf]
    %v322 = vld [vmem:[#allocation9 + $0x14] sm:$0xf]
    %v323 = vld [vmem:[#allocation9 + $0x18] sm:$0xf]
    %v324 = vld [vmem:[#allocation9 + $0x1c] sm:$0xf]
    %v325 = vld [vmem:[#allocation9 + $0x20] sm:$0xf]
    %v326 = vld [vmem:[#allocation9 + $0x24] sm:$0xf]
    %v327 = vld [vmem:[#allocation9 + $0x28] sm:$0xf]
    %v328 = vld [vmem:[#allocation9 + $0x2c] sm:$0xf]
    %v329 = vld [vmem:[#allocation9 + $0x30] sm:$0xf]
    %v330 = vld [vmem:[#allocation9 + $0x34] sm:$0xf]
    %v331 = vld [vmem:[#allocation9 + $0x38] sm:$0xf]
    %v332 = vld [vmem:[#allocation9 + $0x3c] sm:$0xf]
    %v349 = vunpack.c.l.b16 %v317
    %v350 = vunpack.c.l.b16 %v318
    %v351 = vunpack.c.l.b16 %v319
    %v352 = vunpack.c.l.b16 %v320
    %v353 = vunpack.c.l.b16 %v321
    %v354 = vunpack.c.l.b16 %v322
    %v355 = vunpack.c.l.b16 %v323
    %v356 = vunpack.c.l.b16 %v324
    %v357 = vunpack.c.l.b16 %v325
    %v358 = vunpack.c.l.b16 %v326
    %v359 = vunpack.c.l.b16 %v327
    %v360 = vunpack.c.l.b16 %v328
    %v361 = vunpack.c.l.b16 %v329
    %v362 = vunpack.c.l.b16 %v330
    %v363 = vunpack.c.l.b16 %v331
    %v364 = vunpack.c.l.b16 %v332
    %v365 = vpack.c.b16 %v350, %v349
    %v366 = vpack.c.b16 %v352, %v351
    %v367 = vpack.c.b16 %v354, %v353
    %v368 = vpack.c.b16 %v356, %v355
    %v369 = vpack.c.b16 %v358, %v357
    %v370 = vpack.c.b16 %v360, %v359
    %v371 = vpack.c.b16 %v362, %v361
    %v372 = vpack.c.b16 %v364, %v363
    %381 = vmatprep.subr.bf16.mxu0 0
    %382 = vmatpush1.bf16.msra.mxu0 %v365
    %383 = vmatprep.subr.bf16.mxu0 0
    %384 = vmatpush1.bf16.msra.mxu0 %v366
    %385 = vmatprep.subr.bf16.mxu0 0
    %386 = vmatpush1.bf16.msra.mxu0 %v367
    %387 = vmatprep.subr.bf16.mxu0 0
    %388 = vmatpush1.bf16.msra.mxu0 %v368
    %389 = vmatprep.subr.bf16.mxu0 0
    %390 = vmatpush1.bf16.msra.mxu0 %v369
    %391 = vmatprep.subr.bf16.mxu0 0
    %392 = vmatpush1.bf16.msra.mxu0 %v370
    %393 = vmatprep.subr.bf16.mxu0 0
    %394 = vmatpush1.bf16.msra.mxu0 %v371
    %395 = vmatprep.subr.bf16.mxu0 0
    %396 = vmatpush1.bf16.msra.mxu0 %v372
    %397 = vmatprep.subr.bf16.mxu0 0
    %398 = vmatpush1.bf16.msra.mxu0 0
    %399 = vmatprep.subr.bf16.mxu0 0
    %400 = vmatpush1.bf16.msra.mxu0 0
    %401 = vmatprep.subr.bf16.mxu0 0
    %402 = vmatpush1.bf16.msra.mxu0 0
    %403 = vmatprep.subr.bf16.mxu0 0
    %404 = vmatpush1.bf16.msra.mxu0 0
    %405 = vmatprep.subr.bf16.mxu0 0
    %406 = vmatpush1.bf16.msra.mxu0 0
    %407 = vmatprep.subr.bf16.mxu0 0
    %408 = vmatpush1.bf16.msra.mxu0 0
    %409 = vmatprep.subr.bf16.mxu0 0
    %410 = vmatpush1.bf16.msra.mxu0 0
    %411 = vmatprep.subr.bf16.mxu0 0
    %412 = vmatpush1.bf16.msra.mxu0 0
    %413 = vmatprep.mubr.bf16.mxu0 0
    %414 = vmatmul.mubr.bf16.gmra.mrb[0].mxu0 %v316
    %v415 = vpop.f32.mrb[0].mxu0
    %v416 = vadd.f32 0.0, %v415
    %v417 = vpop.f32.mrb[0].mxu0
    %v418 = vpop.f32.mrb[0].mxu0
    %v419 = vpop.f32.mrb[0].mxu0
    %420 = vdwg.mxu0
    %v421 = vld [vmem:[%s6] sm:$0x1]
    %v423 = vlaneseq
    %v424 = vshrl.u32 %v423, 7
    %v425 = vsub.s32 0, %v424
    %v426 = vrot.slane %v421, %v425
    %v428 = vadd.f32 %v416, %v426
    %vm429 = vcmask 130048
    %430 = vst.msk [vmem:[#allocation11] sm:$0xff] %vm429, %v428
    // Predicated region
    $region50: #{tpu_custom_call.1} parent=1 // pred_check
      _
    $region51: #{tpu_custom_call.1} parent=1 // pred_check_branch
      %432 = sbr.rel (0) target = $region53
    $region52: #{tpu_custom_call.1} parent=1 // pred_region
      %s434 = ssub.s32 128, 128
      %435 = vsyncadd [#allocation5], %s434
      %s437 = sshll.u32 [#allocation11], 4
      %s438 = int_to_ptr.vmem [resolvable:$true] %s437
      %440 = dma.vmem_to_hbm [thread:$0]  %s438, 128, %s7, [#allocation5]
    $region53: #{tpu_custom_call.1} parent=1 // pred_fallthru
      _
    // Predicated region
    $region54: #{tpu_custom_call.1} parent=1 // pred_check
      _
    $region55: #{tpu_custom_call.1} parent=1 // pred_check_branch
      %442 = sbr.rel (0) target = $region57
    $region56: #{tpu_custom_call.1} parent=1 // pred_region
      %443 = dma.done [#allocation5], 128
    $region57: #{tpu_custom_call.1} parent=1 // pred_fallthru
      _
    %444 = vsyncpa [#allocation4], 1
    %445 = vsyncpa [#allocation7], 1
    %446 = vsyncpa [#allocation10], 1
    %447 = vsyncpa [#allocation5], 1

</llo_original>
